<compile_context>
chip_gen: v6e
topology: v6e:2x2x1
jax: 0.10.0
libtpu: 0.0.40
codegen_flags: <defaults>
</compile_context>

<pallas_src>
import jax
import jax.numpy as jnp
from jax.experimental import pallas as pl
from jax.experimental.pallas import tpu as pltpu

_LANE = 128


def _critic_kernel(state_ref, action_ref, w1a_ref, w1b_ref, b1_ref,
                   w2_ref, b2_ref, w3_ref, out_ref):
    cdt = w1a_ref.dtype  # MXU compute dtype (bf16 by default)

    s = state_ref[...].astype(cdt)
    a = action_ref[...].astype(cdt)

    # Layer 1: state @ W1a + action @ W1b + b1, ReLU (f32 accumulate / bias).
    h1 = (jnp.dot(s, w1a_ref[...], preferred_element_type=jnp.float32)
          + jnp.dot(a, w1b_ref[...], preferred_element_type=jnp.float32)
          + b1_ref[...])
    h1 = jnp.maximum(h1, 0.0)

    # Layer 2: h1 @ W2 + b2, ReLU.
    h2 = jnp.dot(h1.astype(cdt), w2_ref[...],
                 preferred_element_type=jnp.float32) + b2_ref[...]
    h2 = jnp.maximum(h2, 0.0)

    # Layer 3: VPU multiply + lane reduction instead of an N=1 MXU matmul;
    # emit a lane-dense (1, TB/128, 128) output block.
    _, sub, lane = out_ref.shape
    h2r = h2.reshape(sub, lane, h2.shape[-1])        # (sub, 128, H1)
    q = jnp.sum(h2r * w3_ref[...], axis=-1)          # (sub, 128); w3_ref is (1, H1)
    out_ref[...] = q[None].astype(out_ref.dtype)


def critic_forward(state, action, params, *, batch_tile=1024,
                   compute_dtype=jnp.bfloat16):
    """Pallas-backed Critic forward.  state: (B, S), action: (B, A) -> (B, 1)."""
    w1, b1, w2, b2, w3, b3 = params
    B, S = state.shape
    A = action.shape[1]
    in_dim, H0 = w1.shape
    H1 = w2.shape[1]
    assert in_dim == S + A
    assert batch_tile % _LANE == 0

    # Batch tile: multiple of 128, capped, aiming for >= 2 grid steps
    # (v7x megacore) whenever B is large enough.
    TB = max(_LANE, min(batch_tile, pl.cdiv(B, 2 * _LANE) * _LANE))
    num_tiles = pl.cdiv(B, TB)
    sub = TB // _LANE

    # Only pad when the whole batch is smaller than one tile (tiny).  For
    # B >= TB the ragged last tile relies on Pallas partial blocks: its
    # out-of-range rows produce garbage Q values that are sliced away below.
    if B < TB:
        pad = TB - B
        state = jnp.pad(state, ((0, pad), (0, 0)))
        action = jnp.pad(action, ((0, pad), (0, 0)))

    # Split W1 so state/action stream untouched (no concat pass); cast the
    # tiny VMEM-resident matmul weights to the compute dtype once.
    w1a = w1[:S].astype(compute_dtype)               # (S, H0)
    w1b = w1[S:].astype(compute_dtype)               # (A, H0)
    w2c = w2.astype(compute_dtype)                   # (H0, H1)
    b1r = b1.reshape(1, H0).astype(jnp.float32)
    b2r = b2.reshape(1, H1).astype(jnp.float32)
    w3r = w3.reshape(1, H1).astype(jnp.float32)

    def resident(arr):
        # Full-array block, resident in VMEM across all grid steps.
        return pl.BlockSpec(arr.shape, lambda i: (0, 0))

    out = pl.pallas_call(
        _critic_kernel,
        grid=(num_tiles,),
        in_specs=[
            pl.BlockSpec((TB, S), lambda i: (i, 0)),   # state, tiled over batch
            pl.BlockSpec((TB, A), lambda i: (i, 0)),   # action, tiled over batch
            resident(w1a), resident(w1b), resident(b1r),
            resident(w2c), resident(b2r), resident(w3r),
        ],
        out_specs=pl.BlockSpec((1, sub, _LANE), lambda i: (i, 0, 0)),
        out_shape=jax.ShapeDtypeStruct((num_tiles, sub, _LANE), jnp.float32),
        compiler_params=pltpu.CompilerParams(
            dimension_semantics=("parallel",)),
    )(state, action, w1a, w1b, b1r, w2c, b2r, w3r)

    # Lane-dense slab -> (B, 1), dropping ragged-tile garbage rows; fold the
    # scalar output bias here (keeps one padded (8,128) resident out of VMEM).
    return out.reshape(-1)[:B].reshape(B, 1) + b3.reshape(1, 1).astype(jnp.float32)


def init_critic_params(key, state_dim, action_dim, hidden_sizes):
    """Deterministic synthetic parameters (nn.Linear weights stored transposed
    as (in_features, out_features))."""
    h0, h1 = hidden_sizes
    ks = jax.random.split(key, 6)
    s1 = 1.0 / jnp.sqrt(state_dim + action_dim)
    s2 = 1.0 / jnp.sqrt(h0)
    s3 = 1.0 / jnp.sqrt(h1)
    w1 = jax.random.uniform(ks[0], (state_dim + action_dim, h0),
                            minval=-s1, maxval=s1, dtype=jnp.float32)
    b1 = jax.random.uniform(ks[1], (h0,), minval=-s1, maxval=s1,
                            dtype=jnp.float32)
    w2 = jax.random.uniform(ks[2], (h0, h1), minval=-s2, maxval=s2,
                            dtype=jnp.float32)
    b2 = jax.random.uniform(ks[3], (h1,), minval=-s2, maxval=s2,
                            dtype=jnp.float32)
    w3 = jax.random.uniform(ks[4], (h1,), minval=-s3, maxval=s3,
                            dtype=jnp.float32)
    b3 = jax.random.uniform(ks[5], (1,), minval=-s3, maxval=s3,
                            dtype=jnp.float32)
    return (w1, b1, w2, b2, w3, b3)


def critic_reference(state, action, params, compute_dtype=jnp.bfloat16):
    """Pure-JAX reference with the same bf16 weight/activation rounding as the
    kernel (all matmuls accumulate in f32)."""
    w1, b1, w2, b2, w3, b3 = params
    f32 = jnp.float32
    x = jnp.concatenate([state, action], axis=1).astype(compute_dtype).astype(f32)
    h = jnp.maximum(x @ w1.astype(compute_dtype).astype(f32) + b1, 0.0)
    h = h.astype(compute_dtype).astype(f32)
    h = jnp.maximum(h @ w2.astype(compute_dtype).astype(f32) + b2, 0.0)
    return (h @ w3)[:, None] + b3


if __name__ == "__main__":
    key = jax.random.PRNGKey(0)
    k_state, k_action, k_params = jax.random.split(key, 3)

    batch = 8
    state_dim = 16
    action_dim = 8
    hidden_sizes = (32, 32)

    state = jax.random.normal(k_state, (batch, state_dim), dtype=jnp.float32)
    action = jax.random.normal(k_action, (batch, action_dim), dtype=jnp.float32)
    params = init_critic_params(k_params, state_dim, action_dim, hidden_sizes)

    q = critic_forward(state, action, params)
    q = jax.block_until_ready(q)

    q_ref = critic_reference(state, action, params)
    assert q.shape == (batch, 1), q.shape
    max_err = jnp.max(jnp.abs(q - q_ref))
    assert jnp.allclose(q, q_ref, atol=2e-3, rtol=2e-3), (
        f"mismatch vs reference, max abs err {max_err}")

    print("KERNEL_OK")
</pallas_src>

<mosaic_0001>
module attributes {stable_mosaic.version = 11 : i64} {
  func.func @_critic_kernel(%arg0: i32, %arg1: memref<128x16xf32, #tpu.memory_space<vmem>>, %arg2: memref<128x8xf32, #tpu.memory_space<vmem>>, %arg3: memref<16x32xbf16, #tpu.memory_space<vmem>>, %arg4: memref<8x32xbf16, #tpu.memory_space<vmem>>, %arg5: memref<1x32xf32, #tpu.memory_space<vmem>>, %arg6: memref<32x32xbf16, #tpu.memory_space<vmem>>, %arg7: memref<1x32xf32, #tpu.memory_space<vmem>>, %arg8: memref<1x32xf32, #tpu.memory_space<vmem>>, %arg9: memref<1x1x128xf32, #tpu.memory_space<vmem>>) attributes {dimension_semantics = [#tpu.dimension_semantics<parallel>], iteration_bounds = array<i64: 1>, scalar_prefetch = 0 : i64, scratch_operands = 0 : i64, tpu.core_type = #tpu.core_type<tc>, window_params = [{transform_indices = @transform_0, window_bounds = array<i64: 128, 16>}, {transform_indices = @transform_1, window_bounds = array<i64: 128, 8>}, {pipeline_mode = #tpu.pipeline_mode<synchronous>, transform_indices = @transform_2, window_bounds = array<i64: 16, 32>}, {pipeline_mode = #tpu.pipeline_mode<synchronous>, transform_indices = @transform_3, window_bounds = array<i64: 8, 32>}, {pipeline_mode = #tpu.pipeline_mode<synchronous>, transform_indices = @transform_4, window_bounds = array<i64: 1, 32>}, {pipeline_mode = #tpu.pipeline_mode<synchronous>, transform_indices = @transform_5, window_bounds = array<i64: 32, 32>}, {pipeline_mode = #tpu.pipeline_mode<synchronous>, transform_indices = @transform_6, window_bounds = array<i64: 1, 32>}, {pipeline_mode = #tpu.pipeline_mode<synchronous>, transform_indices = @transform_7, window_bounds = array<i64: 1, 32>}, {transform_indices = @transform_8, window_bounds = array<i64: 1, 1, 128>}]} {
    %c0 = arith.constant 0 : index
    %c0_0 = arith.constant 0 : index
    %0 = vector.load %arg1[%c0, %c0_0] : memref<128x16xf32, #tpu.memory_space<vmem>>, vector<128x16xf32>
    %1 = arith.truncf %0 : vector<128x16xf32> to vector<128x16xbf16>
    %c0_1 = arith.constant 0 : index
    %c0_2 = arith.constant 0 : index
    %2 = vector.load %arg2[%c0_1, %c0_2] : memref<128x8xf32, #tpu.memory_space<vmem>>, vector<128x8xf32>
    %3 = arith.truncf %2 : vector<128x8xf32> to vector<128x8xbf16>
    %c0_3 = arith.constant 0 : index
    %c0_4 = arith.constant 0 : index
    %4 = vector.load %arg3[%c0_3, %c0_4] : memref<16x32xbf16, #tpu.memory_space<vmem>>, vector<16x32xbf16>
    %cst = arith.constant dense<0.000000e+00> : vector<128x32xf32>
    %5 = tpu.matmul %1, %4, %cst {dimension_numbers = #tpu.dot_dimension_numbers<[1], [0], [0], [1], [0, 0, 1, 1], [], []>} : vector<128x16xbf16>, vector<16x32xbf16>, vector<128x32xf32> -> vector<128x32xf32>
    %c0_5 = arith.constant 0 : index
    %c0_6 = arith.constant 0 : index
    %6 = vector.load %arg4[%c0_5, %c0_6] : memref<8x32xbf16, #tpu.memory_space<vmem>>, vector<8x32xbf16>
    %cst_7 = arith.constant dense<0.000000e+00> : vector<128x32xf32>
    %7 = tpu.matmul %3, %6, %cst_7 {dimension_numbers = #tpu.dot_dimension_numbers<[1], [0], [0], [1], [0, 0, 1, 1], [], []>} : vector<128x8xbf16>, vector<8x32xbf16>, vector<128x32xf32> -> vector<128x32xf32>
    %8 = arith.addf %5, %7 : vector<128x32xf32>
    %c0_8 = arith.constant 0 : index
    %c0_9 = arith.constant 0 : index
    %9 = vector.load %arg5[%c0_8, %c0_9] : memref<1x32xf32, #tpu.memory_space<vmem>>, vector<1x32xf32>
    %10 = vector.broadcast %9 : vector<1x32xf32> to vector<128x32xf32>
    %11 = arith.addf %8, %10 : vector<128x32xf32>
    %cst_10 = arith.constant 0.000000e+00 : f32
    %12 = vector.broadcast %cst_10 : f32 to vector<128x32xf32>
    %13 = arith.maximumf %11, %12 : vector<128x32xf32>
    %14 = arith.truncf %13 : vector<128x32xf32> to vector<128x32xbf16>
    %c0_11 = arith.constant 0 : index
    %c0_12 = arith.constant 0 : index
    %15 = vector.load %arg6[%c0_11, %c0_12] : memref<32x32xbf16, #tpu.memory_space<vmem>>, vector<32x32xbf16>
    %cst_13 = arith.constant dense<0.000000e+00> : vector<128x32xf32>
    %16 = tpu.matmul %14, %15, %cst_13 {dimension_numbers = #tpu.dot_dimension_numbers<[1], [0], [0], [1], [0, 0, 1, 1], [], []>} : vector<128x32xbf16>, vector<32x32xbf16>, vector<128x32xf32> -> vector<128x32xf32>
    %c0_14 = arith.constant 0 : index
    %c0_15 = arith.constant 0 : index
    %17 = vector.load %arg7[%c0_14, %c0_15] : memref<1x32xf32, #tpu.memory_space<vmem>>, vector<1x32xf32>
    %18 = vector.broadcast %17 : vector<1x32xf32> to vector<128x32xf32>
    %19 = arith.addf %16, %18 : vector<128x32xf32>
    %cst_16 = arith.constant 0.000000e+00 : f32
    %20 = vector.broadcast %cst_16 : f32 to vector<128x32xf32>
    %21 = arith.maximumf %19, %20 : vector<128x32xf32>
    %22 = vector.shape_cast %21 : vector<128x32xf32> to vector<1x128x32xf32>
    %c0_17 = arith.constant 0 : index
    %c0_18 = arith.constant 0 : index
    %23 = vector.load %arg8[%c0_17, %c0_18] : memref<1x32xf32, #tpu.memory_space<vmem>>, vector<1x32xf32>
    %24 = vector.shape_cast %23 : vector<1x32xf32> to vector<1x1x32xf32>
    %25 = vector.broadcast %24 : vector<1x1x32xf32> to vector<1x128x32xf32>
    %26 = arith.mulf %22, %25 : vector<1x128x32xf32>
    %cst_19 = arith.constant dense<0.000000e+00> : vector<1x128xf32>
    %27 = vector.multi_reduction <add>, %26, %cst_19 [2] : vector<1x128x32xf32> to vector<1x128xf32>
    %28 = vector.shape_cast %27 : vector<1x128xf32> to vector<1x1x128xf32>
    %c0_20 = arith.constant 0 : index
    %c0_21 = arith.constant 0 : index
    %c0_22 = arith.constant 0 : index
    %29 = vector.load %arg9[%c0_20, %c0_21, %c0_22] : memref<1x1x128xf32, #tpu.memory_space<vmem>>, vector<1x1x128xf32>
    tpu.vector_store %arg9[%c0_20, %c0_21, %c0_22], %28 {strides = array<i32>} : memref<1x1x128xf32, #tpu.memory_space<vmem>>, vector<1x1x128xf32>,
    return
  }
  func.func @transform_0(%arg0: i32) -> (i32, i32) {
    %c0_i32 = arith.constant 0 : i32
    %c0_i32_0 = arith.constant 0 : i32
    return %arg0, %c0_i32 : i32, i32
  }
  func.func @transform_1(%arg0: i32) -> (i32, i32) {
    %c0_i32 = arith.constant 0 : i32
    %c0_i32_0 = arith.constant 0 : i32
    return %arg0, %c0_i32 : i32, i32
  }
  func.func @transform_2(%arg0: i32) -> (i32, i32) {
    %c0_i32 = arith.constant 0 : i32
    %c0_i32_0 = arith.constant 0 : i32
    %c0_i32_1 = arith.constant 0 : i32
    return %c0_i32, %c0_i32_0 : i32, i32
  }
  func.func @transform_3(%arg0: i32) -> (i32, i32) {
    %c0_i32 = arith.constant 0 : i32
    %c0_i32_0 = arith.constant 0 : i32
    %c0_i32_1 = arith.constant 0 : i32
    return %c0_i32, %c0_i32_0 : i32, i32
  }
  func.func @transform_4(%arg0: i32) -> (i32, i32) {
    %c0_i32 = arith.constant 0 : i32
    %c0_i32_0 = arith.constant 0 : i32
    %c0_i32_1 = arith.constant 0 : i32
    return %c0_i32, %c0_i32_0 : i32, i32
  }
  func.func @transform_5(%arg0: i32) -> (i32, i32) {
    %c0_i32 = arith.constant 0 : i32
    %c0_i32_0 = arith.constant 0 : i32
    %c0_i32_1 = arith.constant 0 : i32
    return %c0_i32, %c0_i32_0 : i32, i32
  }
  func.func @transform_6(%arg0: i32) -> (i32, i32) {
    %c0_i32 = arith.constant 0 : i32
    %c0_i32_0 = arith.constant 0 : i32
    %c0_i32_1 = arith.constant 0 : i32
    return %c0_i32, %c0_i32_0 : i32, i32
  }
  func.func @transform_7(%arg0: i32) -> (i32, i32) {
    %c0_i32 = arith.constant 0 : i32
    %c0_i32_0 = arith.constant 0 : i32
    %c0_i32_1 = arith.constant 0 : i32
    return %c0_i32, %c0_i32_0 : i32, i32
  }
  func.func @transform_8(%arg0: i32) -> (i32, i32, i32) {
    %c0_i32 = arith.constant 0 : i32
    %c0_i32_0 = arith.constant 0 : i32
    %c0_i32_1 = arith.constant 0 : i32
    return %arg0, %c0_i32, %c0_i32_0 : i32, i32, i32
  }
}

</mosaic_0001>

<llo_original>
// kernel: tpu_custom_call.1
$region0: #{tpu_custom_call.1}
  #allocation0 [shape = 'u32[]', space=smem, size = 0x4, offset = 0x4, fixed_abs, tag = 'smem constant byte address 0x4 - core index']
  #allocation1 [shape = 'u32[144,128]{1,0:T(1,128)}', space=vmem, size = 0x12000, scoped, tag = 'internal scratch']
  %s0 = inlined_call_operand.vmem [shape: f32[128,16], index: 0, kind: input, shape index: {}]
  %s1 = inlined_call_operand.vmem [shape: f32[128,8], index: 1, kind: input, shape index: {}]
  %s2 = inlined_call_operand.vmem [shape: bf16[16,32], index: 2, kind: input, shape index: {}]
  %s3 = inlined_call_operand.vmem [shape: bf16[8,32], index: 3, kind: input, shape index: {}]
  %s4 = inlined_call_operand.vmem [shape: f32[1,32], index: 4, kind: input, shape index: {}]
  %s5 = inlined_call_operand.vmem [shape: bf16[32,32], index: 5, kind: input, shape index: {}]
  %s6 = inlined_call_operand.vmem [shape: f32[1,32], index: 6, kind: input, shape index: {}]
  %s7 = inlined_call_operand.vmem [shape: f32[1,32], index: 7, kind: input, shape index: {}]
  %s8 = inlined_call_operand.hbm [shape: f32[1,1,128], index: 8, kind: output, shape index: {}]
  %s9 = sld [smem:[#allocation0]]
  $region42: #{tpu_custom_call.1} parent=0
    _
  %s11 = ssub.s32 1, %s9
  %s12 = scalar_select 0, %s11, %s9
  $region1: #{tpu_custom_call.1} parent=0
    #allocation2 [shape = 'u8[512]{0}', space=vmem, size = 0x400, scoped, tag = 'output window, operand 0, single buffered']
    #allocation3 [shape = 's32[1]{0}', space=sflag, size = 0x4, scoped, tag = 'scoped memory for tpu_custom_call.1']
    %13 = vsyncpa [#allocation3], 0
    // Predicated region
    $region2: #{tpu_custom_call.1} parent=1 // pred_check
      _
    $region3: #{tpu_custom_call.1} parent=1 // pred_check_branch
      %15 = sbr.rel (0) target = $region5
    $region4: #{tpu_custom_call.1} parent=1 // pred_region
      _
    $region5: #{tpu_custom_call.1} parent=1 // pred_fallthru
      _
    // Predicated region
    $region6: #{tpu_custom_call.1} parent=1 // pred_check
      _
    $region7: #{tpu_custom_call.1} parent=1 // pred_check_branch
      %17 = sbr.rel (0) target = $region9
    $region8: #{tpu_custom_call.1} parent=1 // pred_region
      _
    $region9: #{tpu_custom_call.1} parent=1 // pred_fallthru
      _
    // Predicated region
    $region10: #{tpu_custom_call.1} parent=1 // pred_check
      _
    $region11: #{tpu_custom_call.1} parent=1 // pred_check_branch
      %19 = sbr.rel (0) target = $region13
    $region12: #{tpu_custom_call.1} parent=1 // pred_region
      _
    $region13: #{tpu_custom_call.1} parent=1 // pred_fallthru
      _
    // Predicated region
    $region14: #{tpu_custom_call.1} parent=1 // pred_check
      _
    $region15: #{tpu_custom_call.1} parent=1 // pred_check_branch
      %21 = sbr.rel (0) target = $region17
    $region16: #{tpu_custom_call.1} parent=1 // pred_region
      _
    $region17: #{tpu_custom_call.1} parent=1 // pred_fallthru
      _
    // Predicated region
    $region18: #{tpu_custom_call.1} parent=1 // pred_check
      _
    $region19: #{tpu_custom_call.1} parent=1 // pred_check_branch
      %23 = sbr.rel (0) target = $region21
    $region20: #{tpu_custom_call.1} parent=1 // pred_region
      _
    $region21: #{tpu_custom_call.1} parent=1 // pred_fallthru
      _
    // Predicated region
    $region22: #{tpu_custom_call.1} parent=1 // pred_check
      _
    $region23: #{tpu_custom_call.1} parent=1 // pred_check_branch
      %25 = sbr.rel (0) target = $region25
    $region24: #{tpu_custom_call.1} parent=1 // pred_region
      _
    $region25: #{tpu_custom_call.1} parent=1 // pred_fallthru
      _
    // Predicated region
    $region26: #{tpu_custom_call.1} parent=1 // pred_check
      _
    $region27: #{tpu_custom_call.1} parent=1 // pred_check_branch
      %27 = sbr.rel (0) target = $region29
    $region28: #{tpu_custom_call.1} parent=1 // pred_region
      _
    $region29: #{tpu_custom_call.1} parent=1 // pred_fallthru
      _
    // Predicated region
    $region30: #{tpu_custom_call.1} parent=1 // pred_check
      _
    $region31: #{tpu_custom_call.1} parent=1 // pred_check_branch
      %29 = sbr.rel (0) target = $region33
    $region32: #{tpu_custom_call.1} parent=1 // pred_region
      _
    $region33: #{tpu_custom_call.1} parent=1 // pred_fallthru
      _
    %v31 = vld [vmem:[%s0] sm:$0xff]
    %v32 = vld [vmem:[%s0 + $0x8] sm:$0xff]
    %v33 = vld [vmem:[%s0 + $0x10] sm:$0xff]
    %v34 = vld [vmem:[%s0 + $0x18] sm:$0xff]
    %v35 = vld [vmem:[%s0 + $0x20] sm:$0xff]
    %v36 = vld [vmem:[%s0 + $0x28] sm:$0xff]
    %v37 = vld [vmem:[%s0 + $0x30] sm:$0xff]
    %v38 = vld [vmem:[%s0 + $0x38] sm:$0xff]
    %v39 = vld [vmem:[%s0 + $0x40] sm:$0xff]
    %v40 = vld [vmem:[%s0 + $0x48] sm:$0xff]
    %v41 = vld [vmem:[%s0 + $0x50] sm:$0xff]
    %v42 = vld [vmem:[%s0 + $0x58] sm:$0xff]
    %v43 = vld [vmem:[%s0 + $0x60] sm:$0xff]
    %v44 = vld [vmem:[%s0 + $0x68] sm:$0xff]
    %v45 = vld [vmem:[%s0 + $0x70] sm:$0xff]
    %v46 = vld [vmem:[%s0 + $0x78] sm:$0xff]
    %v47 = vpack.c.bf16 %v32, %v31
    %v48 = vpack.c.bf16 %v34, %v33
    %v49 = vpack.c.bf16 %v36, %v35
    %v50 = vpack.c.bf16 %v38, %v37
    %v51 = vpack.c.bf16 %v40, %v39
    %v52 = vpack.c.bf16 %v42, %v41
    %v53 = vpack.c.bf16 %v44, %v43
    %v54 = vpack.c.bf16 %v46, %v45
    %v55 = vld [vmem:[%s1] sm:$0xff]
    %v56 = vld [vmem:[%s1 + $0x8] sm:$0xff]
    %v57 = vld [vmem:[%s1 + $0x10] sm:$0xff]
    %v58 = vld [vmem:[%s1 + $0x18] sm:$0xff]
    %v59 = vld [vmem:[%s1 + $0x20] sm:$0xff]
    %v60 = vld [vmem:[%s1 + $0x28] sm:$0xff]
    %v61 = vld [vmem:[%s1 + $0x30] sm:$0xff]
    %v62 = vld [vmem:[%s1 + $0x38] sm:$0xff]
    %v63 = vld [vmem:[%s1 + $0x40] sm:$0xff]
    %v64 = vld [vmem:[%s1 + $0x48] sm:$0xff]
    %v65 = vld [vmem:[%s1 + $0x50] sm:$0xff]
    %v66 = vld [vmem:[%s1 + $0x58] sm:$0xff]
    %v67 = vld [vmem:[%s1 + $0x60] sm:$0xff]
    %v68 = vld [vmem:[%s1 + $0x68] sm:$0xff]
    %v69 = vld [vmem:[%s1 + $0x70] sm:$0xff]
    %v70 = vld [vmem:[%s1 + $0x78] sm:$0xff]
    %v71 = vpack.c.bf16 %v56, %v55
    %v72 = vpack.c.bf16 %v58, %v57
    %v73 = vpack.c.bf16 %v60, %v59
    %v74 = vpack.c.bf16 %v62, %v61
    %v75 = vpack.c.bf16 %v64, %v63
    %v76 = vpack.c.bf16 %v66, %v65
    %v77 = vpack.c.bf16 %v68, %v67
    %v78 = vpack.c.bf16 %v70, %v69
    %v79 = vld [vmem:[%s2] sm:$0xf]
    %v80 = vld [vmem:[%s2 + $0x4] sm:$0xf]
    %v81 = vld [vmem:[%s3] sm:$0xf]
    %vm82 = vcmask 64512
    %v84 = vsel %vm82, %v71, 0
    %v87 = vsel %vm82, %v72, 0
    %v90 = vsel %vm82, %v73, 0
    %v93 = vsel %vm82, %v74, 0
    %v96 = vsel %vm82, %v75, 0
    %v99 = vsel %vm82, %v76, 0
    %v102 = vsel %vm82, %v77, 0
    %v105 = vsel %vm82, %v78, 0
    %vm107 = vcmask 1043456
    %v109 = vsel %vm107, %v81, 0
    %111 = vmatprep.subr.bf16.mxu0 0
    %112 = vmatpush1.bf16.msra.mxu0 0
    %113 = vmatprep.subr.bf16.mxu0 0
    %114 = vmatpush1.bf16.msra.mxu0 0
    %115 = vmatprep.subr.bf16.mxu0 0
    %116 = vmatpush1.bf16.msra.mxu0 0
    %117 = vmatprep.subr.bf16.mxu0 0
    %118 = vmatpush1.bf16.msra.mxu0 0
    %119 = vmatprep.subr.bf16.mxu0 0
    %120 = vmatpush1.bf16.msra.mxu0 0
    %121 = vmatprep.subr.bf16.mxu0 0
    %122 = vmatpush1.bf16.msra.mxu0 0
    %123 = vmatprep.subr.bf16.mxu0 0
    %124 = vmatpush1.bf16.msra.mxu0 0
    %125 = vmatprep.subr.bf16.mxu0 0
    %126 = vmatpush1.bf16.msra.mxu0 %v109
    %127 = vmatprep.subr.bf16.mxu0 0
    %128 = vmatpush2.bf16.msra.mxu0 0
    %129 = vmatprep.subr.bf16.mxu0 0
    %130 = vmatpush2.bf16.msra.mxu0 0
    %131 = vmatprep.subr.bf16.mxu0 0
    %132 = vmatpush2.bf16.msra.mxu0 0
    %133 = vmatprep.subr.bf16.mxu0 0
    %134 = vmatpush2.bf16.msra.mxu0 0
    %135 = vmatprep.subr.bf16.mxu0 0
    %136 = vmatpush2.bf16.msra.mxu0 0
    %137 = vmatprep.subr.bf16.mxu0 0
    %138 = vmatpush2.bf16.msra.mxu0 0
    %139 = vmatprep.subr.bf16.mxu0 0
    %140 = vmatpush2.bf16.msra.mxu0 0
    %141 = vmatprep.subr.bf16.mxu0 0
    %142 = vmatpush2.bf16.msra.mxu0 0
    %143 = vmatprep.mubr.bf16.mxu0 0
    %144 = vmatmul.mubr.bf16.gmra.mxu0 %v84
    %v145 = vpop.f32.mrf.mxu0
    %v146 = vadd.f32 0.0, %v145
    %v147 = vpop.f32.mrf.mxu0
    %v148 = vpop.f32.mrf.mxu0
    %v149 = vadd.f32 0.0, %v148
    %v150 = vpop.f32.mrf.mxu0
    %151 = vmatprep.mubr.bf16.mxu0 0
    %152 = vmatmul.mubr.bf16.gmra.mxu0 %v87
    %v153 = vpop.f32.mrf.mxu0
    %v154 = vadd.f32 0.0, %v153
    %v155 = vpop.f32.mrf.mxu0
    %v156 = vpop.f32.mrf.mxu0
    %v157 = vadd.f32 0.0, %v156
    %v158 = vpop.f32.mrf.mxu0
    %159 = vmatprep.mubr.bf16.mxu0 0
    %160 = vmatmul.mubr.bf16.gmra.mxu0 %v90
    %v161 = vpop.f32.mrf.mxu0
    %v162 = vadd.f32 0.0, %v161
    %v163 = vpop.f32.mrf.mxu0
    %v164 = vpop.f32.mrf.mxu0
    %v165 = vadd.f32 0.0, %v164
    %v166 = vpop.f32.mrf.mxu0
    %167 = vmatprep.mubr.bf16.mxu0 0
    %168 = vmatmul.mubr.bf16.gmra.mxu0 %v93
    %v169 = vpop.f32.mrf.mxu0
    %v170 = vadd.f32 0.0, %v169
    %v171 = vpop.f32.mrf.mxu0
    %v172 = vpop.f32.mrf.mxu0
    %v173 = vadd.f32 0.0, %v172
    %v174 = vpop.f32.mrf.mxu0
    %175 = vmatprep.mubr.bf16.mxu0 0
    %176 = vmatmul.mubr.bf16.gmra.mxu0 %v96
    %v177 = vpop.f32.mrf.mxu0
    %v178 = vadd.f32 0.0, %v177
    %v179 = vpop.f32.mrf.mxu0
    %v180 = vpop.f32.mrf.mxu0
    %v181 = vadd.f32 0.0, %v180
    %v182 = vpop.f32.mrf.mxu0
    %183 = vmatprep.mubr.bf16.mxu0 0
    %184 = vmatmul.mubr.bf16.gmra.mxu0 %v99
    %v185 = vpop.f32.mrf.mxu0
    %v186 = vadd.f32 0.0, %v185
    %v187 = vpop.f32.mrf.mxu0
    %v188 = vpop.f32.mrf.mxu0
    %v189 = vadd.f32 0.0, %v188
    %v190 = vpop.f32.mrf.mxu0
    %191 = vmatprep.mubr.bf16.mxu0 0
    %192 = vmatmul.mubr.bf16.gmra.mxu0 %v102
    %v193 = vpop.f32.mrf.mxu0
    %v194 = vadd.f32 0.0, %v193
    %v195 = vpop.f32.mrf.mxu0
    %v196 = vpop.f32.mrf.mxu0
    %v197 = vadd.f32 0.0, %v196
    %v198 = vpop.f32.mrf.mxu0
    %199 = vmatprep.mubr.bf16.mxu0 0
    %200 = vmatmul.mubr.bf16.gmra.mxu0 %v105
    %v201 = vpop.f32.mrf.mxu0
    %v202 = vadd.f32 0.0, %v201
    %v203 = vpop.f32.mrf.mxu0
    %v204 = vpop.f32.mrf.mxu0
    %v205 = vadd.f32 0.0, %v204
    %v206 = vpop.f32.mrf.mxu0
    %207 = vdwg.mxu0
    %v210 = vunpack.c.l.b16 %v79
    %v211 = vunpack.c.l.b16 %v80
    %v212 = vpack.c.b16 %v211, %v210
    %vm214 = vcmask 130048
    %v216 = vsel %vm214, %v47, 0
    %v219 = vsel %vm214, %v48, 0
    %v222 = vsel %vm214, %v49, 0
    %v225 = vsel %vm214, %v50, 0
    %v228 = vsel %vm214, %v51, 0
    %v231 = vsel %vm214, %v52, 0
    %v234 = vsel %vm214, %v53, 0
    %v237 = vsel %vm214, %v54, 0
    %239 = vmatprep.subr.bf16.mxu0 0
    %240 = vmatpush1.bf16.msra.mxu0 0
    %241 = vmatprep.subr.bf16.mxu0 0
    %242 = vmatpush1.bf16.msra.mxu0 0
    %243 = vmatprep.subr.bf16.mxu0 0
    %244 = vmatpush1.bf16.msra.mxu0 0
    %245 = vmatprep.subr.bf16.mxu0 0
    %246 = vmatpush1.bf16.msra.mxu0 0
    %247 = vmatprep.subr.bf16.mxu0 0
    %248 = vmatpush1.bf16.msra.mxu0 0
    %249 = vmatprep.subr.bf16.mxu0 0
    %250 = vmatpush1.bf16.msra.mxu0 0
    %251 = vmatprep.subr.bf16.mxu0 0
    %252 = vmatpush1.bf16.msra.mxu0 0
    %253 = vmatprep.subr.bf16.mxu0 0
    %254 = vmatpush1.bf16.msra.mxu0 %v212
    %255 = vmatprep.subr.bf16.mxu0 0
    %256 = vmatpush2.bf16.msra.mxu0 0
    %257 = vmatprep.subr.bf16.mxu0 0
    %258 = vmatpush2.bf16.msra.mxu0 0
    %259 = vmatprep.subr.bf16.mxu0 0
    %260 = vmatpush2.bf16.msra.mxu0 0
    %261 = vmatprep.subr.bf16.mxu0 0
    %262 = vmatpush2.bf16.msra.mxu0 0
    %263 = vmatprep.subr.bf16.mxu0 0
    %264 = vmatpush2.bf16.msra.mxu0 0
    %265 = vmatprep.subr.bf16.mxu0 0
    %266 = vmatpush2.bf16.msra.mxu0 0
    %267 = vmatprep.subr.bf16.mxu0 0
    %268 = vmatpush2.bf16.msra.mxu0 0
    %269 = vmatprep.subr.bf16.mxu0 0
    %270 = vmatpush2.bf16.msra.mxu0 0
    %271 = vmatprep.mubr.bf16.mxu0 0
    %272 = vmatmul.mubr.bf16.gmra.mxu0 %v216
    %v273 = vpop.f32.mrf.mxu0
    %v274 = vadd.f32 %v146, %v273
    %v275 = vpop.f32.mrf.mxu0
    %v276 = vpop.f32.mrf.mxu0
    %v277 = vadd.f32 %v149, %v276
    %v278 = vpop.f32.mrf.mxu0
    %279 = vmatprep.mubr.bf16.mxu0 0
    %280 = vmatmul.mubr.bf16.gmra.mxu0 %v219
    %v281 = vpop.f32.mrf.mxu0
    %v282 = vadd.f32 %v154, %v281
    %v283 = vpop.f32.mrf.mxu0
    %v284 = vpop.f32.mrf.mxu0
    %v285 = vadd.f32 %v157, %v284
    %v286 = vpop.f32.mrf.mxu0
    %287 = vmatprep.mubr.bf16.mxu0 0
    %288 = vmatmul.mubr.bf16.gmra.mxu0 %v222
    %v289 = vpop.f32.mrf.mxu0
    %v290 = vadd.f32 %v162, %v289
    %v291 = vpop.f32.mrf.mxu0
    %v292 = vpop.f32.mrf.mxu0
    %v293 = vadd.f32 %v165, %v292
    %v294 = vpop.f32.mrf.mxu0
    %295 = vmatprep.mubr.bf16.mxu0 0
    %296 = vmatmul.mubr.bf16.gmra.mxu0 %v225
    %v297 = vpop.f32.mrf.mxu0
    %v298 = vadd.f32 %v170, %v297
    %v299 = vpop.f32.mrf.mxu0
    %v300 = vpop.f32.mrf.mxu0
    %v301 = vadd.f32 %v173, %v300
    %v302 = vpop.f32.mrf.mxu0
    %303 = vmatprep.mubr.bf16.mxu0 0
    %304 = vmatmul.mubr.bf16.gmra.mxu0 %v228
    %v305 = vpop.f32.mrf.mxu0
    %v306 = vadd.f32 %v178, %v305
    %v307 = vpop.f32.mrf.mxu0
    %v308 = vpop.f32.mrf.mxu0
    %v309 = vadd.f32 %v181, %v308
    %v310 = vpop.f32.mrf.mxu0
    %311 = vmatprep.mubr.bf16.mxu0 0
    %312 = vmatmul.mubr.bf16.gmra.mxu0 %v231
    %v313 = vpop.f32.mrf.mxu0
    %v314 = vadd.f32 %v186, %v313
    %v315 = vpop.f32.mrf.mxu0
    %v316 = vpop.f32.mrf.mxu0
    %v317 = vadd.f32 %v189, %v316
    %v318 = vpop.f32.mrf.mxu0
    %319 = vmatprep.mubr.bf16.mxu0 0
    %320 = vmatmul.mubr.bf16.gmra.mxu0 %v234
    %v321 = vpop.f32.mrf.mxu0
    %v322 = vadd.f32 %v194, %v321
    %v323 = vpop.f32.mrf.mxu0
    %v324 = vpop.f32.mrf.mxu0
    %v325 = vadd.f32 %v197, %v324
    %v326 = vpop.f32.mrf.mxu0
    %327 = vmatprep.mubr.bf16.mxu0 0
    %328 = vmatmul.mubr.bf16.gmra.mxu0 %v237
    %v329 = vpop.f32.mrf.mxu0
    %v330 = vadd.f32 %v202, %v329
    %v331 = vpop.f32.mrf.mxu0
    %v332 = vpop.f32.mrf.mxu0
    %v333 = vadd.f32 %v205, %v332
    %v334 = vpop.f32.mrf.mxu0
    %335 = vdwg.mxu0
    %v336 = vld [vmem:[%s4] sm:$0x1]
    %v338 = vlaneseq
    %v339 = vshrl.u32 %v338, 7
    %v340 = vsub.s32 0, %v339
    %v341 = vrot.slane %v336, %v340
    %v343 = vadd.f32 %v274, %v341
    %v344 = vadd.f32 %v277, %v341
    %v345 = vadd.f32 %v282, %v341
    %v346 = vadd.f32 %v285, %v341
    %v347 = vadd.f32 %v290, %v341
    %v348 = vadd.f32 %v293, %v341
    %v349 = vadd.f32 %v298, %v341
    %v350 = vadd.f32 %v301, %v341
    %v351 = vadd.f32 %v306, %v341
    %v352 = vadd.f32 %v309, %v341
    %v353 = vadd.f32 %v314, %v341
    %v354 = vadd.f32 %v317, %v341
    %v355 = vadd.f32 %v322, %v341
    %v356 = vadd.f32 %v325, %v341
    %v357 = vadd.f32 %v330, %v341
    %v358 = vadd.f32 %v333, %v341
    %v359 = vmax.f32 %v343, 0.0
    %v360 = vmax.f32 %v344, 0.0
    %v361 = vmax.f32 %v345, 0.0
    %v362 = vmax.f32 %v346, 0.0
    %v363 = vmax.f32 %v347, 0.0
    %v364 = vmax.f32 %v348, 0.0
    %v365 = vmax.f32 %v349, 0.0
    %v366 = vmax.f32 %v350, 0.0
    %v367 = vmax.f32 %v351, 0.0
    %v368 = vmax.f32 %v352, 0.0
    %v369 = vmax.f32 %v353, 0.0
    %v370 = vmax.f32 %v354, 0.0
    %v371 = vmax.f32 %v355, 0.0
    %v372 = vmax.f32 %v356, 0.0
    %v373 = vmax.f32 %v357, 0.0
    %v374 = vmax.f32 %v358, 0.0
    %v375 = vpack.c.bf16 %v360, %v359
    %v376 = vpack.c.bf16 %v362, %v361
    %v377 = vpack.c.bf16 %v364, %v363
    %v378 = vpack.c.bf16 %v366, %v365
    %v379 = vpack.c.bf16 %v368, %v367
    %v380 = vpack.c.bf16 %v370, %v369
    %v381 = vpack.c.bf16 %v372, %v371
    %v382 = vpack.c.bf16 %v374, %v373
    %v383 = vld [vmem:[%s5] sm:$0xf]
    %v384 = vld [vmem:[%s5 + $0x4] sm:$0xf]
    %v385 = vld [vmem:[%s5 + $0x8] sm:$0xf]
    %v386 = vld [vmem:[%s5 + $0xc] sm:$0xf]
    %v387 = vld [vmem:[%s6] sm:$0x1]
    %v389 = vlaneseq
    %v390 = vshrl.u32 %v389, 7
    %v391 = vsub.s32 0, %v390
    %v392 = vrot.slane %v387, %v391
    %v398 = vunpack.c.l.b16 %v383
    %v399 = vunpack.c.l.b16 %v384
    %v400 = vunpack.c.l.b16 %v385
    %v401 = vunpack.c.l.b16 %v386
    %v402 = vpack.c.b16 %v399, %v398
    %v403 = vpack.c.b16 %v401, %v400
    %vm406 = vcmask 261120
    %v408 = vsel %vm406, %v375, 0
    %v411 = vsel %vm406, %v376, 0
    %v414 = vsel %vm406, %v377, 0
    %v417 = vsel %vm406, %v378, 0
    %v420 = vsel %vm406, %v379, 0
    %v423 = vsel %vm406, %v380, 0
    %v426 = vsel %vm406, %v381, 0
    %v429 = vsel %vm406, %v382, 0
    %431 = vmatprep.subr.bf16.mxu0 0
    %432 = vmatpush1.bf16.msra.mxu0 0
    %433 = vmatprep.subr.bf16.mxu0 0
    %434 = vmatpush1.bf16.msra.mxu0 0
    %435 = vmatprep.subr.bf16.mxu0 0
    %436 = vmatpush1.bf16.msra.mxu0 0
    %437 = vmatprep.subr.bf16.mxu0 0
    %438 = vmatpush1.bf16.msra.mxu0 0
    %439 = vmatprep.subr.bf16.mxu0 0
    %440 = vmatpush1.bf16.msra.mxu0 0
    %441 = vmatprep.subr.bf16.mxu0 0
    %442 = vmatpush1.bf16.msra.mxu0 0
    %443 = vmatprep.subr.bf16.mxu0 0
    %444 = vmatpush1.bf16.msra.mxu0 %v403
    %445 = vmatprep.subr.bf16.mxu0 0
    %446 = vmatpush1.bf16.msra.mxu0 %v402
    %447 = vmatprep.subr.bf16.mxu0 0
    %448 = vmatpush2.bf16.msra.mxu0 0
    %449 = vmatprep.subr.bf16.mxu0 0
    %450 = vmatpush2.bf16.msra.mxu0 0
    %451 = vmatprep.subr.bf16.mxu0 0
    %452 = vmatpush2.bf16.msra.mxu0 0
    %453 = vmatprep.subr.bf16.mxu0 0
    %454 = vmatpush2.bf16.msra.mxu0 0
    %455 = vmatprep.subr.bf16.mxu0 0
    %456 = vmatpush2.bf16.msra.mxu0 0
    %457 = vmatprep.subr.bf16.mxu0 0
    %458 = vmatpush2.bf16.msra.mxu0 0
    %459 = vmatprep.subr.bf16.mxu0 0
    %460 = vmatpush2.bf16.msra.mxu0 0
    %461 = vmatprep.subr.bf16.mxu0 0
    %462 = vmatpush2.bf16.msra.mxu0 0
    %463 = vmatprep.mubr.bf16.mxu0 0
    %464 = vmatmul.mubr.bf16.gmra.mxu0 %v408
    %v465 = vpop.f32.mrf.mxu0
    %v466 = vadd.f32 %v392, %v465
    %v467 = vpop.f32.mrf.mxu0
    %v468 = vpop.f32.mrf.mxu0
    %v469 = vadd.f32 %v392, %v468
    %v470 = vpop.f32.mrf.mxu0
    %471 = vmatprep.mubr.bf16.mxu0 0
    %472 = vmatmul.mubr.bf16.gmra.mxu0 %v411
    %v473 = vpop.f32.mrf.mxu0
    %v474 = vadd.f32 %v392, %v473
    %v475 = vpop.f32.mrf.mxu0
    %v476 = vpop.f32.mrf.mxu0
    %v477 = vadd.f32 %v392, %v476
    %v478 = vpop.f32.mrf.mxu0
    %479 = vmatprep.mubr.bf16.mxu0 0
    %480 = vmatmul.mubr.bf16.gmra.mxu0 %v414
    %v481 = vpop.f32.mrf.mxu0
    %v482 = vadd.f32 %v392, %v481
    %v483 = vpop.f32.mrf.mxu0
    %v484 = vpop.f32.mrf.mxu0
    %v485 = vadd.f32 %v392, %v484
    %v486 = vpop.f32.mrf.mxu0
    %487 = vmatprep.mubr.bf16.mxu0 0
    %488 = vmatmul.mubr.bf16.gmra.mxu0 %v417
    %v489 = vpop.f32.mrf.mxu0
    %v490 = vadd.f32 %v392, %v489
    %v491 = vpop.f32.mrf.mxu0
    %v492 = vpop.f32.mrf.mxu0
    %v493 = vadd.f32 %v392, %v492
    %v494 = vpop.f32.mrf.mxu0
    %495 = vmatprep.mubr.bf16.mxu0 0
    %496 = vmatmul.mubr.bf16.gmra.mxu0 %v420
    %v497 = vpop.f32.mrf.mxu0
    %v498 = vadd.f32 %v392, %v497
    %v499 = vpop.f32.mrf.mxu0
    %v500 = vpop.f32.mrf.mxu0
    %v501 = vadd.f32 %v392, %v500
    %v502 = vpop.f32.mrf.mxu0
    %503 = vmatprep.mubr.bf16.mxu0 0
    %504 = vmatmul.mubr.bf16.gmra.mxu0 %v423
    %v505 = vpop.f32.mrf.mxu0
    %v506 = vadd.f32 %v392, %v505
    %v507 = vpop.f32.mrf.mxu0
    %v508 = vpop.f32.mrf.mxu0
    %v509 = vadd.f32 %v392, %v508
    %v510 = vpop.f32.mrf.mxu0
    %511 = vmatprep.mubr.bf16.mxu0 0
    %512 = vmatmul.mubr.bf16.gmra.mxu0 %v426
    %v513 = vpop.f32.mrf.mxu0
    %v514 = vadd.f32 %v392, %v513
    %v515 = vpop.f32.mrf.mxu0
    %v516 = vpop.f32.mrf.mxu0
    %v517 = vadd.f32 %v392, %v516
    %v518 = vpop.f32.mrf.mxu0
    %519 = vmatprep.mubr.bf16.mxu0 0
    %520 = vmatmul.mubr.bf16.gmra.mxu0 %v429
    %v521 = vpop.f32.mrf.mxu0
    %v522 = vadd.f32 %v392, %v521
    %v523 = vpop.f32.mrf.mxu0
    %v524 = vpop.f32.mrf.mxu0
    %v525 = vadd.f32 %v392, %v524
    %v526 = vpop.f32.mrf.mxu0
    %527 = vdwg.mxu0
    %v528 = vmax.f32 %v466, 0.0
    %v529 = vmax.f32 %v469, 0.0
    %v530 = vmax.f32 %v474, 0.0
    %v531 = vmax.f32 %v477, 0.0
    %v532 = vmax.f32 %v482, 0.0
    %v533 = vmax.f32 %v485, 0.0
    %v534 = vmax.f32 %v490, 0.0
    %v535 = vmax.f32 %v493, 0.0
    %v536 = vmax.f32 %v498, 0.0
    %v537 = vmax.f32 %v501, 0.0
    %v538 = vmax.f32 %v506, 0.0
    %v539 = vmax.f32 %v509, 0.0
    %v540 = vmax.f32 %v514, 0.0
    %v541 = vmax.f32 %v517, 0.0
    %v542 = vmax.f32 %v522, 0.0
    %v543 = vmax.f32 %v525, 0.0
    %v544 = vld [vmem:[%s7] sm:$0x1]
    %v546 = vlaneseq
    %v547 = vshrl.u32 %v546, 7
    %v548 = vsub.s32 0, %v547
    %v549 = vrot.slane %v544, %v548
    %v551 = vmul.f32 %v528, %v549
    %v552 = vmul.f32 %v529, %v549
    %v553 = vmul.f32 %v530, %v549
    %v554 = vmul.f32 %v531, %v549
    %v555 = vmul.f32 %v532, %v549
    %v556 = vmul.f32 %v533, %v549
    %v557 = vmul.f32 %v534, %v549
    %v558 = vmul.f32 %v535, %v549
    %v559 = vmul.f32 %v536, %v549
    %v560 = vmul.f32 %v537, %v549
    %v561 = vmul.f32 %v538, %v549
    %v562 = vmul.f32 %v539, %v549
    %v563 = vmul.f32 %v540, %v549
    %v564 = vmul.f32 %v541, %v549
    %v565 = vmul.f32 %v542, %v549
    %v566 = vmul.f32 %v543, %v549
    %v567 = vsel %vm406, %v551, 0.0
    %568 = vadd.xlane.f32.xlu0 %v567
    %v569 = vpop.xlane.xlu0 %568
    %v570 = vsel %vm406, %v552, 0.0
    %571 = vadd.xlane.f32.xlu0 %v570
    %v572 = vpop.xlane.xlu0 %571
    %v573 = vsel %vm406, %v553, 0.0
    %574 = vadd.xlane.f32.xlu0 %v573
    %v575 = vpop.xlane.xlu0 %574
    %v576 = vsel %vm406, %v554, 0.0
    %577 = vadd.xlane.f32.xlu0 %v576
    %v578 = vpop.xlane.xlu0 %577
    %v579 = vsel %vm406, %v555, 0.0
    %580 = vadd.xlane.f32.xlu0 %v579
    %v581 = vpop.xlane.xlu0 %580
    %v582 = vsel %vm406, %v556, 0.0
    %583 = vadd.xlane.f32.xlu0 %v582
    %v584 = vpop.xlane.xlu0 %583
    %v585 = vsel %vm406, %v557, 0.0
    %586 = vadd.xlane.f32.xlu0 %v585
    %v587 = vpop.xlane.xlu0 %586
    %v588 = vsel %vm406, %v558, 0.0
    %589 = vadd.xlane.f32.xlu0 %v588
    %v590 = vpop.xlane.xlu0 %589
    %v591 = vsel %vm406, %v559, 0.0
    %592 = vadd.xlane.f32.xlu0 %v591
    %v593 = vpop.xlane.xlu0 %592
    %v594 = vsel %vm406, %v560, 0.0
    %595 = vadd.xlane.f32.xlu0 %v594
    %v596 = vpop.xlane.xlu0 %595
    %v597 = vsel %vm406, %v561, 0.0
    %598 = vadd.xlane.f32.xlu0 %v597
    %v599 = vpop.xlane.xlu0 %598
    %v600 = vsel %vm406, %v562, 0.0
    %601 = vadd.xlane.f32.xlu0 %v600
    %v602 = vpop.xlane.xlu0 %601
    %v603 = vsel %vm406, %v563, 0.0
    %604 = vadd.xlane.f32.xlu0 %v603
    %v605 = vpop.xlane.xlu0 %604
    %v606 = vsel %vm406, %v564, 0.0
    %607 = vadd.xlane.f32.xlu0 %v606
    %v608 = vpop.xlane.xlu0 %607
    %v609 = vsel %vm406, %v565, 0.0
    %610 = vadd.xlane.f32.xlu0 %v609
    %v611 = vpop.xlane.xlu0 %610
    %v612 = vsel %vm406, %v566, 0.0
    %613 = vadd.xlane.f32.xlu0 %v612
    %v614 = vpop.xlane.xlu0 %613
    %v631 = vlaneseq
    %v632 = vand.u32 %v631, 127
    %v633 = vlaneseq
    %v634 = vshrl.u32 %v633, 7
    %v635 = vsub.s32 %v632, %v634
    %v636 = vrot.slane %v569, %v635
    %v637 = vadd.s32 %v632, 4294967288
    %v638 = vlaneseq
    %v639 = vshrl.u32 %v638, 7
    %v640 = vsub.s32 %v637, %v639
    %v641 = vrot.slane %v572, %v640
    %vm642 = vcmask 130112
    %v643 = vsel %vm642, %v641, %v636
    %v644 = vadd.s32 %v632, 4294967280
    %v645 = vlaneseq
    %v646 = vshrl.u32 %v645, 7
    %v647 = vsub.s32 %v644, %v646
    %v648 = vrot.slane %v575, %v647
    %vm649 = vcmask 195712
    %v650 = vsel %vm649, %v648, %v643
    %v651 = vadd.s32 %v632, 4294967272
    %v652 = vlaneseq
    %v653 = vshrl.u32 %v652, 7
    %v654 = vsub.s32 %v651, %v653
    %v655 = vrot.slane %v578, %v654
    %vm656 = vcmask 261312
    %v657 = vsel %vm656, %v655, %v650
    %v658 = vadd.s32 %v632, 4294967264
    %v659 = vlaneseq
    %v660 = vshrl.u32 %v659, 7
    %v661 = vsub.s32 %v658, %v660
    %v662 = vrot.slane %v581, %v661
    %vm663 = vcmask 326912
    %v664 = vsel %vm663, %v662, %v657
    %v665 = vadd.s32 %v632, 4294967256
    %v666 = vlaneseq
    %v667 = vshrl.u32 %v666, 7
    %v668 = vsub.s32 %v665, %v667
    %v669 = vrot.slane %v584, %v668
    %vm670 = vcmask 392512
    %v671 = vsel %vm670, %v669, %v664
    %v672 = vadd.s32 %v632, 4294967248
    %v673 = vlaneseq
    %v674 = vshrl.u32 %v673, 7
    %v675 = vsub.s32 %v672, %v674
    %v676 = vrot.slane %v587, %v675
    %vm677 = vcmask 458112
    %v678 = vsel %vm677, %v676, %v671
    %v679 = vadd.s32 %v632, 4294967240
    %v680 = vlaneseq
    %v681 = vshrl.u32 %v680, 7
    %v682 = vsub.s32 %v679, %v681
    %v683 = vrot.slane %v590, %v682
    %vm684 = vcmask 523712
    %v685 = vsel %vm684, %v683, %v678
    %v686 = vadd.s32 %v632, 4294967232
    %v687 = vlaneseq
    %v688 = vshrl.u32 %v687, 7
    %v689 = vsub.s32 %v686, %v688
    %v690 = vrot.slane %v593, %v689
    %vm691 = vcmask 589312
    %v692 = vsel %vm691, %v690, %v685
    %v693 = vadd.s32 %v632, 4294967224
    %v694 = vlaneseq
    %v695 = vshrl.u32 %v694, 7
    %v696 = vsub.s32 %v693, %v695
    %v697 = vrot.slane %v596, %v696
    %vm698 = vcmask 654912
    %v699 = vsel %vm698, %v697, %v692
    %v700 = vadd.s32 %v632, 4294967216
    %v701 = vlaneseq
    %v702 = vshrl.u32 %v701, 7
    %v703 = vsub.s32 %v700, %v702
    %v704 = vrot.slane %v599, %v703
    %vm705 = vcmask 720512
    %v706 = vsel %vm705, %v704, %v699
    %v707 = vadd.s32 %v632, 4294967208
    %v708 = vlaneseq
    %v709 = vshrl.u32 %v708, 7
    %v710 = vsub.s32 %v707, %v709
    %v711 = vrot.slane %v602, %v710
    %vm712 = vcmask 786112
    %v713 = vsel %vm712, %v711, %v706
    %v714 = vadd.s32 %v632, 4294967200
    %v715 = vlaneseq
    %v716 = vshrl.u32 %v715, 7
    %v717 = vsub.s32 %v714, %v716
    %v718 = vrot.slane %v605, %v717
    %vm719 = vcmask 851712
    %v720 = vsel %vm719, %v718, %v713
    %v721 = vadd.s32 %v632, 4294967192
    %v722 = vlaneseq
    %v723 = vshrl.u32 %v722, 7
    %v724 = vsub.s32 %v721, %v723
    %v725 = vrot.slane %v608, %v724
    %vm726 = vcmask 917312
    %v727 = vsel %vm726, %v725, %v720
    %v728 = vadd.s32 %v632, 4294967184
    %v729 = vlaneseq
    %v730 = vshrl.u32 %v729, 7
    %v731 = vsub.s32 %v728, %v730
    %v732 = vrot.slane %v611, %v731
    %vm733 = vcmask 982912
    %v734 = vsel %vm733, %v732, %v727
    %v735 = vadd.s32 %v632, 4294967176
    %v736 = vlaneseq
    %v737 = vshrl.u32 %v736, 7
    %v738 = vsub.s32 %v735, %v737
    %v739 = vrot.slane %v614, %v738
    %vm740 = vcmask 1048512
    %v741 = vsel %vm740, %v739, %v734
    %743 = vst [vmem:[#allocation2] sm:$0x1] %v741
    // Predicated region
    $region34: #{tpu_custom_call.1} parent=1 // pred_check
      _
    $region35: #{tpu_custom_call.1} parent=1 // pred_check_branch
      %745 = sbr.rel (0) target = $region37
    $region36: #{tpu_custom_call.1} parent=1 // pred_region
      %s747 = ssub.s32 16, 16
      %748 = vsyncadd [#allocation3], %s747
      %s750 = sshll.u32 [#allocation2], 4
      %s751 = int_to_ptr.vmem [resolvable:$true] %s750
      %753 = dma.vmem_to_hbm [thread:$0]  %s751, 16, %s8, [#allocation3]
    $region37: #{tpu_custom_call.1} parent=1 // pred_fallthru
      _
    // Predicated region
    $region38: #{tpu_custom_call.1} parent=1 // pred_check
      _
    $region39: #{tpu_custom_call.1} parent=1 // pred_check_branch
      %755 = sbr.rel (0) target = $region41
    $region40: #{tpu_custom_call.1} parent=1 // pred_region
      %756 = dma.done [#allocation3], 16
    $region41: #{tpu_custom_call.1} parent=1 // pred_fallthru
      _
    %757 = vsyncpa [#allocation3], 1

</llo_original>
